<compile_context>
chip_gen: v7x
topology: tpu7x:2x2x1
jax: 0.10.0
libtpu: 0.0.40
codegen_flags: <defaults>
</compile_context>

<pallas_src>
import functools

import numpy as np
import jax
import jax.numpy as jnp
from jax.experimental import pallas as pl
from jax.experimental.pallas import tpu as pltpu


SCALE = [1, 2, 4, 8, 16, 32, 64, 128]


# ----------------------------------------------------------------------------
# Constant construction
# ----------------------------------------------------------------------------
def _build_pool_matrix(channels: int, groups: int, nf_pad: int) -> jnp.ndarray:
    """(nf_pad, C) pooling matrix.

    Rows 0..nf-1 are the ChannelPool means over channel slices.  Row `nf` (the
    first zero-padding row — nf = 2**groups - 1 is never a multiple of 8, so it
    always exists) holds (1/nf) * sum_f pool_f, so the per-position feature
    mean comes out of the MXU matmul for free.  Remaining rows are zero.
    """
    rows = []
    for i in SCALE[:groups]:
        for j in range(i):
            s = channels * j // i
            e = channels * (j + 1) // i
            row = np.zeros((channels,), np.float32)
            row[s:e] = 1.0 / float(e - s)
            rows.append(row)
    nf = len(rows)
    mat = np.zeros((nf_pad, channels), np.float32)
    mat[:nf] = np.stack(rows, axis=0)
    mat[nf] = mat[:nf].sum(axis=0) / float(nf)          # folded mean row
    return jnp.asarray(mat)


# ----------------------------------------------------------------------------
# Kernel
# ----------------------------------------------------------------------------
def _ppca_kernel(x_ref, pool_ref, wt_ref, wsum_ref, o_ref, *,
                 nf_inv: float, tb: int, mean_row: int):
    # x_ref:    (TB, C, HW)   streamed tile (f32 or bf16)
    # pool_ref: (NFP, C)      pooling matrix (row `mean_row` = folded mean row)
    # wt_ref:   (NFP, HW)     weight.T, zero-padded rows (incl. row `mean_row`)
    # wsum_ref: (1, HW)       sum over features of weight
    # o_ref:    (TB, C, HW)
    pool = pool_ref[...]
    wt = wt_ref[...]
    wsum = wsum_ref[...]

    for t in range(tb):                               # static unrolled loop
        xt = x_ref[t].astype(jnp.float32)             # (C, HW), f32 in-vreg

        # All ChannelPool means (+ their mean) in one MXU matmul: (NFP, HW).
        y = jnp.dot(pool, xt, preferred_element_type=jnp.float32)

        mean = y[mean_row:mean_row + 1, :]            # (1, HW) — free from MXU
        # Padding rows of y are 0 and row `mean_row` is `mean`, so
        # sum_f y_f^2 = sum_all y^2 - mean^2.
        ex2 = (jnp.sum(y * y, axis=0, keepdims=True) - mean * mean) * nf_inv
        # NOTE: matches the reference's unbiased=False std; like the reference
        # this divides by zero if all nf pooled features are equal.
        var = jnp.maximum(ex2 - mean * mean, 0.0)
        inv_std = jax.lax.rsqrt(var)                  # EUP, not VALU divide

        # Folded normalization + style integration:
        #   z = sum_f w_f*(y_f-mean)/std = inv_std*(sum_f w_f*y_f - mean*sum_f w_f)
        wy = jnp.sum(wt * y, axis=0, keepdims=True)   # (1, HW); padded rows are 0
        z = inv_std * (wy - mean * wsum)
        gate = jax.nn.sigmoid(z)                      # (1, HW)

        o_ref[t] = (xt * gate).astype(o_ref.dtype)    # broadcast over channels


# ----------------------------------------------------------------------------
# Generation-aware tiling helpers
# ----------------------------------------------------------------------------
def _vmem_capacity_bytes() -> int:
    try:
        return int(pltpu.get_tpu_info().vmem_capacity_bytes)
    except Exception:
        return 64 << 20          # conservative fallback (v7x-sized)


def _tensorcores_per_chip() -> int:
    try:
        kind = jax.devices()[0].device_kind.lower()
        if "v7" in kind:
            return 2
    except Exception:
        pass
    return 1


def _choose_block_batches(b: int, c: int, hw: int, nf_pad: int,
                          budget_bytes: int, itemsize: int,
                          min_steps: int) -> int:
    """How many batch elements per grid step (biggest block that fits VMEM)."""
    per_batch = 2 * 2 * c * hw * itemsize              # x + out tiles, double-buffered
    const_bytes = 2 * 4 * (nf_pad * (c + hw) + hw)     # pool + wt + wsum (f32, 2 bufs)
    avail = max(budget_bytes - const_bytes, per_batch)
    tb = int(max(1, min(b, avail // per_batch)))
    tb = min(tb, 32)                                    # bound kernel unroll length
    # Only v7x (2 TCs) wants >= 2 grid steps so the parallel axis shards cores.
    while tb > 1 and -(-b // tb) < min_steps:
        tb -= 1
    while b % tb:                                       # uniform blocks
        tb -= 1
    return tb


# ----------------------------------------------------------------------------
# Forward wrapper
# ----------------------------------------------------------------------------
def ppca_forward(x: jnp.ndarray, weight: jnp.ndarray, groups: int = 4) -> jnp.ndarray:
    """x: (B, C, H, W) NCHW (f32 or bf16).  weight: (H*W, NF), NF = sum(SCALE[:groups])."""
    b, c, h, w = x.shape
    hw = h * w
    nf = sum(SCALE[:groups])
    assert weight.shape == (hw, nf)
    nf_pad = ((nf + 7) // 8) * 8                        # sublane-aligned rows
    mean_row = nf                                       # first padding row = folded mean

    pool_mat = _build_pool_matrix(c, groups, nf_pad)    # (NFP, C)
    wt = jnp.zeros((nf_pad, hw), jnp.float32).at[:nf].set(weight.T.astype(jnp.float32))
    wsum = jnp.sum(weight.astype(jnp.float32), axis=1).reshape(1, hw)

    # NCHW -> (B, C, HW): metadata-only reshape, no transpose passes in HBM.
    x_flat = x.reshape(b, c, hw)
    itemsize = jnp.dtype(x_flat.dtype).itemsize

    cap = _vmem_capacity_bytes()
    budget = min(cap // 2, 64 << 20)                    # ~32 MiB on v7x, 64 MiB on v5e/v6e
    vmem_limit = int(min(cap - (4 << 20), budget + (16 << 20)))
    min_steps = 2 if (_tensorcores_per_chip() >= 2 and b >= 2) else 1

    tb = _choose_block_batches(b, c, hw, nf_pad, budget, itemsize, min_steps)
    nb = b // tb

    kernel = functools.partial(_ppca_kernel, nf_inv=1.0 / float(nf),
                               tb=tb, mean_row=mean_row)

    out = pl.pallas_call(
        kernel,
        out_shape=jax.ShapeDtypeStruct((b, c, hw), x_flat.dtype),
        grid_spec=pltpu.PrefetchScalarGridSpec(
            num_scalar_prefetch=0,
            grid=(nb,),
            in_specs=[
                pl.BlockSpec((tb, c, hw), lambda i: (i, 0, 0)),     # streamed x tile
                pl.BlockSpec((nf_pad, c), lambda i: (0, 0)),        # pool matrix (const)
                pl.BlockSpec((nf_pad, hw), lambda i: (0, 0)),       # weight.T (const)
                pl.BlockSpec((1, hw), lambda i: (0, 0)),            # sum_f(weight) (const)
            ],
            out_specs=pl.BlockSpec((tb, c, hw), lambda i: (i, 0, 0)),
        ),
        compiler_params=pltpu.CompilerParams(
            dimension_semantics=("parallel",),
            vmem_limit_bytes=vmem_limit,
        ),
    )(x_flat, pool_mat, wt, wsum)

    return out.reshape(b, c, h, w)


# ----------------------------------------------------------------------------
# Pure-JAX reference (correctness oracle, transcribes the PyTorch forward)
# ----------------------------------------------------------------------------
def ppca_reference(x: jnp.ndarray, weight: jnp.ndarray, groups: int = 4) -> jnp.ndarray:
    b, c, h, w = x.shape
    hw = h * w
    feats = []
    for i in SCALE[:groups]:
        for j in range(i):
            s = c * j // i
            e = c * (j + 1) // i
            feats.append(jnp.mean(x[:, s:e, :, :], axis=1).reshape(b, 1, hw))
    y_t = jnp.concatenate(feats, axis=1)                       # (B, NF, HW)
    mean = jnp.mean(y_t, axis=1, keepdims=True)                # (B, 1, HW)
    std = jnp.sqrt(jnp.mean((y_t - mean) ** 2, axis=1, keepdims=True))
    y_t = (y_t - mean) / std
    y = jnp.transpose(y_t, (0, 2, 1))                          # (B, HW, NF)
    z = jnp.sum(y * weight[None, :, :], axis=2)                # (B, HW)
    gate = jax.nn.sigmoid(z).reshape(b, 1, h, w)
    return x * gate


if __name__ == "__main__":
    # layer_idx = 2 -> num_fea = 14**2 = 196 -> spatial 14x14 (small, consistent).
    b, c, h, w = 4, 16, 14, 14
    groups = 4
    nf = sum(SCALE[:groups])                                   # 15
    num_fea = h * w                                            # 196

    key = jax.random.PRNGKey(0)
    kx, kw = jax.random.split(key)
    x = jax.random.normal(kx, (b, c, h, w), dtype=jnp.float32)
    # The module zero-fills `weight` (gate would be a constant 0.5); use a
    # deterministic random weight to exercise the full path.  The `bias`
    # Parameter is never used in forward.
    weight = 0.1 * jax.random.normal(kw, (num_fea, nf), dtype=jnp.float32)

    # f32 streaming path + tight check.
    out = jax.block_until_ready(ppca_forward(x, weight, groups=groups))
    ref = ppca_reference(x, weight, groups=groups)
    assert out.shape == (b, c, h, w)
    assert jnp.allclose(out, ref, atol=1e-4, rtol=1e-4), float(jnp.max(jnp.abs(out - ref)))

    # bf16 streaming path (review item: halve HBM traffic); stats stay f32.
    out_bf16 = jax.block_until_ready(
        ppca_forward(x.astype(jnp.bfloat16), weight, groups=groups))
    assert out_bf16.dtype == jnp.bfloat16
    out_bf16_f32 = out_bf16.astype(jnp.float32)
    assert bool(jnp.isfinite(out_bf16_f32).all())
    assert float(jnp.max(jnp.abs(out_bf16_f32 - ref))) < 0.1

    print("KERNEL_OK")
</pallas_src>

<mosaic_0001>
module attributes {stable_mosaic.version = 11 : i64} {
  func.func @_ppca_kernel(%arg0: i32, %arg1: memref<4x16x196xf32, #tpu.memory_space<vmem>>, %arg2: memref<16x16xf32, #tpu.memory_space<vmem>>, %arg3: memref<16x196xf32, #tpu.memory_space<vmem>>, %arg4: memref<1x196xf32, #tpu.memory_space<vmem>>, %arg5: memref<4x16x196xf32, #tpu.memory_space<vmem>>) attributes {dimension_semantics = [#tpu.dimension_semantics<parallel>], iteration_bounds = array<i64: 1>, scalar_prefetch = 0 : i64, scratch_operands = 0 : i64, tpu.core_type = #tpu.core_type<tc>, window_params = [{transform_indices = @transform_0, window_bounds = array<i64: 4, 16, 196>}, {pipeline_mode = #tpu.pipeline_mode<synchronous>, transform_indices = @transform_1, window_bounds = array<i64: 16, 16>}, {pipeline_mode = #tpu.pipeline_mode<synchronous>, transform_indices = @transform_2, window_bounds = array<i64: 16, 196>}, {pipeline_mode = #tpu.pipeline_mode<synchronous>, transform_indices = @transform_3, window_bounds = array<i64: 1, 196>}, {transform_indices = @transform_4, window_bounds = array<i64: 4, 16, 196>}]} {
    %c0 = arith.constant 0 : index
    %c0_0 = arith.constant 0 : index
    %0 = vector.load %arg2[%c0, %c0_0] : memref<16x16xf32, #tpu.memory_space<vmem>>, vector<16x16xf32>
    %c0_1 = arith.constant 0 : index
    %c0_2 = arith.constant 0 : index
    %1 = vector.load %arg3[%c0_1, %c0_2] : memref<16x196xf32, #tpu.memory_space<vmem>>, vector<16x196xf32>
    %c0_3 = arith.constant 0 : index
    %c0_4 = arith.constant 0 : index
    %2 = vector.load %arg4[%c0_3, %c0_4] : memref<1x196xf32, #tpu.memory_space<vmem>>, vector<1x196xf32>
    %c0_5 = arith.constant 0 : index
    %c0_6 = arith.constant 0 : index
    %c0_7 = arith.constant 0 : index
    %3 = vector.load %arg1[%c0_5, %c0_6, %c0_7] : memref<4x16x196xf32, #tpu.memory_space<vmem>>, vector<1x16x196xf32>
    %4 = vector.shape_cast %3 : vector<1x16x196xf32> to vector<16x196xf32>
    %cst = arith.constant dense<0.000000e+00> : vector<16x196xf32>
    %5 = tpu.matmul %0, %4, %cst {dimension_numbers = #tpu.dot_dimension_numbers<[1], [0], [0], [1], [0, 0, 1, 1], [], []>} : vector<16x16xf32>, vector<16x196xf32>, vector<16x196xf32> -> vector<16x196xf32>
    %6 = vector.extract_strided_slice %5 {offsets = [15, 0], sizes = [1, 196], strides = [1, 1]} : vector<16x196xf32> to vector<1x196xf32>
    %7 = arith.mulf %5, %5 : vector<16x196xf32>
    %cst_8 = arith.constant dense<0.000000e+00> : vector<196xf32>
    %8 = vector.multi_reduction <add>, %7, %cst_8 [0] : vector<16x196xf32> to vector<196xf32>
    %9 = vector.shape_cast %8 : vector<196xf32> to vector<1x196xf32>
    %10 = arith.mulf %6, %6 : vector<1x196xf32>
    %11 = arith.subf %9, %10 : vector<1x196xf32>
    %cst_9 = arith.constant 0.0666666701 : f32
    %12 = vector.broadcast %cst_9 : f32 to vector<1x196xf32>
    %13 = arith.mulf %11, %12 : vector<1x196xf32>
    %14 = arith.mulf %6, %6 : vector<1x196xf32>
    %15 = arith.subf %13, %14 : vector<1x196xf32>
    %cst_10 = arith.constant 0.000000e+00 : f32
    %16 = vector.broadcast %cst_10 : f32 to vector<1x196xf32>
    %17 = arith.maximumf %15, %16 : vector<1x196xf32>
    %18 = math.rsqrt %17 : vector<1x196xf32>
    %19 = arith.mulf %1, %5 : vector<16x196xf32>
    %cst_11 = arith.constant dense<0.000000e+00> : vector<196xf32>
    %20 = vector.multi_reduction <add>, %19, %cst_11 [0] : vector<16x196xf32> to vector<196xf32>
    %21 = vector.shape_cast %20 : vector<196xf32> to vector<1x196xf32>
    %22 = arith.mulf %6, %2 : vector<1x196xf32>
    %23 = arith.subf %21, %22 : vector<1x196xf32>
    %24 = arith.mulf %18, %23 : vector<1x196xf32>
    %25 = arith.negf %24 : vector<1x196xf32>
    %26 = math.exp %25 : vector<1x196xf32>
    %cst_12 = arith.constant 1.000000e+00 : f32
    %27 = vector.broadcast %cst_12 : f32 to vector<1x196xf32>
    %28 = arith.addf %27, %26 : vector<1x196xf32>
    %29 = arith.divf %27, %28 : vector<1x196xf32>
    %30 = vector.broadcast %29 : vector<1x196xf32> to vector<16x196xf32>
    %31 = arith.mulf %4, %30 : vector<16x196xf32>
    %c0_13 = arith.constant 0 : index
    %c0_14 = arith.constant 0 : index
    %c0_15 = arith.constant 0 : index
    %32 = vector.load %arg5[%c0_13, %c0_14, %c0_15] : memref<4x16x196xf32, #tpu.memory_space<vmem>>, vector<1x16x196xf32>
    %33 = vector.shape_cast %32 : vector<1x16x196xf32> to vector<16x196xf32>
    %34 = vector.shape_cast %31 : vector<16x196xf32> to vector<1x16x196xf32>
    tpu.vector_store %arg5[%c0_13, %c0_14, %c0_15], %34 {strides = array<i32>} : memref<4x16x196xf32, #tpu.memory_space<vmem>>, vector<1x16x196xf32>,
    %c1 = arith.constant 1 : index
    %c0_16 = arith.constant 0 : index
    %c0_17 = arith.constant 0 : index
    %35 = vector.load %arg1[%c1, %c0_16, %c0_17] : memref<4x16x196xf32, #tpu.memory_space<vmem>>, vector<1x16x196xf32>
    %36 = vector.shape_cast %35 : vector<1x16x196xf32> to vector<16x196xf32>
    %cst_18 = arith.constant dense<0.000000e+00> : vector<16x196xf32>
    %37 = tpu.matmul %0, %36, %cst_18 {dimension_numbers = #tpu.dot_dimension_numbers<[1], [0], [0], [1], [0, 0, 1, 1], [], []>} : vector<16x16xf32>, vector<16x196xf32>, vector<16x196xf32> -> vector<16x196xf32>
    %38 = vector.extract_strided_slice %37 {offsets = [15, 0], sizes = [1, 196], strides = [1, 1]} : vector<16x196xf32> to vector<1x196xf32>
    %39 = arith.mulf %37, %37 : vector<16x196xf32>
    %cst_19 = arith.constant dense<0.000000e+00> : vector<196xf32>
    %40 = vector.multi_reduction <add>, %39, %cst_19 [0] : vector<16x196xf32> to vector<196xf32>
    %41 = vector.shape_cast %40 : vector<196xf32> to vector<1x196xf32>
    %42 = arith.mulf %38, %38 : vector<1x196xf32>
    %43 = arith.subf %41, %42 : vector<1x196xf32>
    %cst_20 = arith.constant 0.0666666701 : f32
    %44 = vector.broadcast %cst_20 : f32 to vector<1x196xf32>
    %45 = arith.mulf %43, %44 : vector<1x196xf32>
    %46 = arith.mulf %38, %38 : vector<1x196xf32>
    %47 = arith.subf %45, %46 : vector<1x196xf32>
    %cst_21 = arith.constant 0.000000e+00 : f32
    %48 = vector.broadcast %cst_21 : f32 to vector<1x196xf32>
    %49 = arith.maximumf %47, %48 : vector<1x196xf32>
    %50 = math.rsqrt %49 : vector<1x196xf32>
    %51 = arith.mulf %1, %37 : vector<16x196xf32>
    %cst_22 = arith.constant dense<0.000000e+00> : vector<196xf32>
    %52 = vector.multi_reduction <add>, %51, %cst_22 [0] : vector<16x196xf32> to vector<196xf32>
    %53 = vector.shape_cast %52 : vector<196xf32> to vector<1x196xf32>
    %54 = arith.mulf %38, %2 : vector<1x196xf32>
    %55 = arith.subf %53, %54 : vector<1x196xf32>
    %56 = arith.mulf %50, %55 : vector<1x196xf32>
    %57 = arith.negf %56 : vector<1x196xf32>
    %58 = math.exp %57 : vector<1x196xf32>
    %cst_23 = arith.constant 1.000000e+00 : f32
    %59 = vector.broadcast %cst_23 : f32 to vector<1x196xf32>
    %60 = arith.addf %59, %58 : vector<1x196xf32>
    %61 = arith.divf %59, %60 : vector<1x196xf32>
    %62 = vector.broadcast %61 : vector<1x196xf32> to vector<16x196xf32>
    %63 = arith.mulf %36, %62 : vector<16x196xf32>
    %c1_24 = arith.constant 1 : index
    %c0_25 = arith.constant 0 : index
    %c0_26 = arith.constant 0 : index
    %64 = vector.load %arg5[%c1_24, %c0_25, %c0_26] : memref<4x16x196xf32, #tpu.memory_space<vmem>>, vector<1x16x196xf32>
    %65 = vector.shape_cast %64 : vector<1x16x196xf32> to vector<16x196xf32>
    %66 = vector.shape_cast %63 : vector<16x196xf32> to vector<1x16x196xf32>
    tpu.vector_store %arg5[%c1_24, %c0_25, %c0_26], %66 {strides = array<i32>} : memref<4x16x196xf32, #tpu.memory_space<vmem>>, vector<1x16x196xf32>,
    %c2 = arith.constant 2 : index
    %c0_27 = arith.constant 0 : index
    %c0_28 = arith.constant 0 : index
    %67 = vector.load %arg1[%c2, %c0_27, %c0_28] : memref<4x16x196xf32, #tpu.memory_space<vmem>>, vector<1x16x196xf32>
    %68 = vector.shape_cast %67 : vector<1x16x196xf32> to vector<16x196xf32>
    %cst_29 = arith.constant dense<0.000000e+00> : vector<16x196xf32>
    %69 = tpu.matmul %0, %68, %cst_29 {dimension_numbers = #tpu.dot_dimension_numbers<[1], [0], [0], [1], [0, 0, 1, 1], [], []>} : vector<16x16xf32>, vector<16x196xf32>, vector<16x196xf32> -> vector<16x196xf32>
    %70 = vector.extract_strided_slice %69 {offsets = [15, 0], sizes = [1, 196], strides = [1, 1]} : vector<16x196xf32> to vector<1x196xf32>
    %71 = arith.mulf %69, %69 : vector<16x196xf32>
    %cst_30 = arith.constant dense<0.000000e+00> : vector<196xf32>
    %72 = vector.multi_reduction <add>, %71, %cst_30 [0] : vector<16x196xf32> to vector<196xf32>
    %73 = vector.shape_cast %72 : vector<196xf32> to vector<1x196xf32>
    %74 = arith.mulf %70, %70 : vector<1x196xf32>
    %75 = arith.subf %73, %74 : vector<1x196xf32>
    %cst_31 = arith.constant 0.0666666701 : f32
    %76 = vector.broadcast %cst_31 : f32 to vector<1x196xf32>
    %77 = arith.mulf %75, %76 : vector<1x196xf32>
    %78 = arith.mulf %70, %70 : vector<1x196xf32>
    %79 = arith.subf %77, %78 : vector<1x196xf32>
    %cst_32 = arith.constant 0.000000e+00 : f32
    %80 = vector.broadcast %cst_32 : f32 to vector<1x196xf32>
    %81 = arith.maximumf %79, %80 : vector<1x196xf32>
    %82 = math.rsqrt %81 : vector<1x196xf32>
    %83 = arith.mulf %1, %69 : vector<16x196xf32>
    %cst_33 = arith.constant dense<0.000000e+00> : vector<196xf32>
    %84 = vector.multi_reduction <add>, %83, %cst_33 [0] : vector<16x196xf32> to vector<196xf32>
    %85 = vector.shape_cast %84 : vector<196xf32> to vector<1x196xf32>
    %86 = arith.mulf %70, %2 : vector<1x196xf32>
    %87 = arith.subf %85, %86 : vector<1x196xf32>
    %88 = arith.mulf %82, %87 : vector<1x196xf32>
    %89 = arith.negf %88 : vector<1x196xf32>
    %90 = math.exp %89 : vector<1x196xf32>
    %cst_34 = arith.constant 1.000000e+00 : f32
    %91 = vector.broadcast %cst_34 : f32 to vector<1x196xf32>
    %92 = arith.addf %91, %90 : vector<1x196xf32>
    %93 = arith.divf %91, %92 : vector<1x196xf32>
    %94 = vector.broadcast %93 : vector<1x196xf32> to vector<16x196xf32>
    %95 = arith.mulf %68, %94 : vector<16x196xf32>
    %c2_35 = arith.constant 2 : index
    %c0_36 = arith.constant 0 : index
    %c0_37 = arith.constant 0 : index
    %96 = vector.load %arg5[%c2_35, %c0_36, %c0_37] : memref<4x16x196xf32, #tpu.memory_space<vmem>>, vector<1x16x196xf32>
    %97 = vector.shape_cast %96 : vector<1x16x196xf32> to vector<16x196xf32>
    %98 = vector.shape_cast %95 : vector<16x196xf32> to vector<1x16x196xf32>
    tpu.vector_store %arg5[%c2_35, %c0_36, %c0_37], %98 {strides = array<i32>} : memref<4x16x196xf32, #tpu.memory_space<vmem>>, vector<1x16x196xf32>,
    %c3 = arith.constant 3 : index
    %c0_38 = arith.constant 0 : index
    %c0_39 = arith.constant 0 : index
    %99 = vector.load %arg1[%c3, %c0_38, %c0_39] : memref<4x16x196xf32, #tpu.memory_space<vmem>>, vector<1x16x196xf32>
    %100 = vector.shape_cast %99 : vector<1x16x196xf32> to vector<16x196xf32>
    %cst_40 = arith.constant dense<0.000000e+00> : vector<16x196xf32>
    %101 = tpu.matmul %0, %100, %cst_40 {dimension_numbers = #tpu.dot_dimension_numbers<[1], [0], [0], [1], [0, 0, 1, 1], [], []>} : vector<16x16xf32>, vector<16x196xf32>, vector<16x196xf32> -> vector<16x196xf32>
    %102 = vector.extract_strided_slice %101 {offsets = [15, 0], sizes = [1, 196], strides = [1, 1]} : vector<16x196xf32> to vector<1x196xf32>
    %103 = arith.mulf %101, %101 : vector<16x196xf32>
    %cst_41 = arith.constant dense<0.000000e+00> : vector<196xf32>
    %104 = vector.multi_reduction <add>, %103, %cst_41 [0] : vector<16x196xf32> to vector<196xf32>
    %105 = vector.shape_cast %104 : vector<196xf32> to vector<1x196xf32>
    %106 = arith.mulf %102, %102 : vector<1x196xf32>
    %107 = arith.subf %105, %106 : vector<1x196xf32>
    %cst_42 = arith.constant 0.0666666701 : f32
    %108 = vector.broadcast %cst_42 : f32 to vector<1x196xf32>
    %109 = arith.mulf %107, %108 : vector<1x196xf32>
    %110 = arith.mulf %102, %102 : vector<1x196xf32>
    %111 = arith.subf %109, %110 : vector<1x196xf32>
    %cst_43 = arith.constant 0.000000e+00 : f32
    %112 = vector.broadcast %cst_43 : f32 to vector<1x196xf32>
    %113 = arith.maximumf %111, %112 : vector<1x196xf32>
    %114 = math.rsqrt %113 : vector<1x196xf32>
    %115 = arith.mulf %1, %101 : vector<16x196xf32>
    %cst_44 = arith.constant dense<0.000000e+00> : vector<196xf32>
    %116 = vector.multi_reduction <add>, %115, %cst_44 [0] : vector<16x196xf32> to vector<196xf32>
    %117 = vector.shape_cast %116 : vector<196xf32> to vector<1x196xf32>
    %118 = arith.mulf %102, %2 : vector<1x196xf32>
    %119 = arith.subf %117, %118 : vector<1x196xf32>
    %120 = arith.mulf %114, %119 : vector<1x196xf32>
    %121 = arith.negf %120 : vector<1x196xf32>
    %122 = math.exp %121 : vector<1x196xf32>
    %cst_45 = arith.constant 1.000000e+00 : f32
    %123 = vector.broadcast %cst_45 : f32 to vector<1x196xf32>
    %124 = arith.addf %123, %122 : vector<1x196xf32>
    %125 = arith.divf %123, %124 : vector<1x196xf32>
    %126 = vector.broadcast %125 : vector<1x196xf32> to vector<16x196xf32>
    %127 = arith.mulf %100, %126 : vector<16x196xf32>
    %c3_46 = arith.constant 3 : index
    %c0_47 = arith.constant 0 : index
    %c0_48 = arith.constant 0 : index
    %128 = vector.load %arg5[%c3_46, %c0_47, %c0_48] : memref<4x16x196xf32, #tpu.memory_space<vmem>>, vector<1x16x196xf32>
    %129 = vector.shape_cast %128 : vector<1x16x196xf32> to vector<16x196xf32>
    %130 = vector.shape_cast %127 : vector<16x196xf32> to vector<1x16x196xf32>
    tpu.vector_store %arg5[%c3_46, %c0_47, %c0_48], %130 {strides = array<i32>} : memref<4x16x196xf32, #tpu.memory_space<vmem>>, vector<1x16x196xf32>,
    return
  }
  func.func @transform_0(%arg0: i32) -> (i32, i32, i32) {
    %c0_i32 = arith.constant 0 : i32
    %c0_i32_0 = arith.constant 0 : i32
    %c0_i32_1 = arith.constant 0 : i32
    return %arg0, %c0_i32, %c0_i32_0 : i32, i32, i32
  }
  func.func @transform_1(%arg0: i32) -> (i32, i32) {
    %c0_i32 = arith.constant 0 : i32
    %c0_i32_0 = arith.constant 0 : i32
    %c0_i32_1 = arith.constant 0 : i32
    return %c0_i32, %c0_i32_0 : i32, i32
  }
  func.func @transform_2(%arg0: i32) -> (i32, i32) {
    %c0_i32 = arith.constant 0 : i32
    %c0_i32_0 = arith.constant 0 : i32
    %c0_i32_1 = arith.constant 0 : i32
    return %c0_i32, %c0_i32_0 : i32, i32
  }
  func.func @transform_3(%arg0: i32) -> (i32, i32) {
    %c0_i32 = arith.constant 0 : i32
    %c0_i32_0 = arith.constant 0 : i32
    %c0_i32_1 = arith.constant 0 : i32
    return %c0_i32, %c0_i32_0 : i32, i32
  }
  func.func @transform_4(%arg0: i32) -> (i32, i32, i32) {
    %c0_i32 = arith.constant 0 : i32
    %c0_i32_0 = arith.constant 0 : i32
    %c0_i32_1 = arith.constant 0 : i32
    return %arg0, %c0_i32, %c0_i32_0 : i32, i32, i32
  }
}

</mosaic_0001>

<llo_original>
// kernel: tpu_custom_call.1
$region0: #{tpu_custom_call.1}
  #allocation0 [shape = 'u32[]', space=smem, size = 0x4, offset = 0x4, fixed_abs, tag = 'smem constant byte address 0x4 - core index']
  #allocation1 [shape = 'u32[144,128]{1,0:T(1,128)}', space=vmem, size = 0x12000, scoped, tag = 'internal scratch']
  %s0 = inlined_call_operand.hbm [shape: f32[4,16,196], index: 0, kind: input, shape index: {}]
  %s1 = inlined_call_operand.hbm [shape: f32[16,16], index: 1, kind: input, shape index: {}]
  %s2 = inlined_call_operand.hbm [shape: f32[16,196], index: 2, kind: input, shape index: {}]
  %s3 = inlined_call_operand.vmem [shape: f32[1,196], index: 3, kind: input, shape index: {}]
  %s4 = inlined_call_operand.hbm [shape: f32[4,16,196], index: 4, kind: output, shape index: {}]
  %s5 = sld [smem:[#allocation0]]
  $region38: #{tpu_custom_call.1} parent=0
    _
  %s7 = ssub.s32 1, %s5
  %s8 = scalar_select 0, %s7, %s5
  $region1: #{tpu_custom_call.1} parent=0
    #allocation2 [shape = 'u8[65536]{0}', space=vmem, size = 0x10000, scoped, tag = 'input window, operand 0, single buffered']
    #allocation3 [shape = 's32[1]{0}', space=sflag, size = 0x4, scoped, tag = 'scoped memory for tpu_custom_call.1']
    #allocation4 [shape = 's32[1]{0}', space=sflag, size = 0x4, scoped, tag = 'scoped memory for tpu_custom_call.1']
    #allocation5 [shape = 'u8[8192]{0}', space=vmem, size = 0x2000, scoped, tag = 'input window, operand 1, single buffered']
    #allocation6 [shape = 's32[1]{0}', space=sflag, size = 0x4, scoped, tag = 'scoped memory for tpu_custom_call.1']
    #allocation7 [shape = 'u8[16384]{0}', space=vmem, size = 0x4000, scoped, tag = 'input window, operand 2, single buffered']
    #allocation8 [shape = 'u8[65536]{0}', space=vmem, size = 0x10000, scoped, tag = 'output window, operand 0, single buffered']
    %9 = vsyncpa [#allocation3], 0
    %10 = vsyncpa [#allocation6], 0
    %11 = vsyncpa [#allocation4], 0
    // Predicated region
    $region2: #{tpu_custom_call.1} parent=1 // pred_check
      _
    $region3: #{tpu_custom_call.1} parent=1 // pred_check_branch
      %13 = sbr.rel (0) target = $region5
    $region4: #{tpu_custom_call.1} parent=1 // pred_region
      %s15 = ssub.s32 2048, 2048
      %16 = vsyncadd [#allocation3], %s15
      %s17 = sshll.u32 [#allocation2], 4
      %s18 = int_to_ptr.vmem [resolvable:$true] %s17
      %23 = dma.hbm_to_vmem [thread:$0]  %s0, 2048, %s18, [#allocation3], 256, 256, 16
    $region5: #{tpu_custom_call.1} parent=1 // pred_fallthru
      _
    // Predicated region
    $region6: #{tpu_custom_call.1} parent=1 // pred_check
      _
    $region7: #{tpu_custom_call.1} parent=1 // pred_check_branch
      %25 = sbr.rel (0) target = $region9
    $region8: #{tpu_custom_call.1} parent=1 // pred_region
      %s27 = ssub.s32 256, 256
      %28 = vsyncadd [#allocation6], %s27
      %s29 = sshll.u32 [#allocation5], 4
      %s30 = int_to_ptr.vmem [resolvable:$true] %s29
      %35 = dma.hbm_to_vmem [thread:$0]  %s1, 256, %s30, [#allocation6], 128, 128, 8
    $region9: #{tpu_custom_call.1} parent=1 // pred_fallthru
      _
    // Predicated region
    $region10: #{tpu_custom_call.1} parent=1 // pred_check
      _
    $region11: #{tpu_custom_call.1} parent=1 // pred_check_branch
      %37 = sbr.rel (0) target = $region13
    $region12: #{tpu_custom_call.1} parent=1 // pred_region
      %s39 = ssub.s32 512, 512
      %40 = vsyncadd [#allocation6], %s39
      %s41 = sshll.u32 [#allocation7], 4
      %s42 = int_to_ptr.vmem [resolvable:$true] %s41
      %47 = dma.hbm_to_vmem [thread:$0]  %s2, 512, %s42, [#allocation6], 256, 256, 16
    $region13: #{tpu_custom_call.1} parent=1 // pred_fallthru
      _
    // Predicated region
    $region14: #{tpu_custom_call.1} parent=1 // pred_check
      _
    $region15: #{tpu_custom_call.1} parent=1 // pred_check_branch
      %49 = sbr.rel (0) target = $region17
    $region16: #{tpu_custom_call.1} parent=1 // pred_region
      _
    $region17: #{tpu_custom_call.1} parent=1 // pred_fallthru
      _
    // Predicated region
    $region18: #{tpu_custom_call.1} parent=1 // pred_check
      _
    $region19: #{tpu_custom_call.1} parent=1 // pred_check_branch
      %51 = sbr.rel (0) target = $region21
    $region20: #{tpu_custom_call.1} parent=1 // pred_region
      %52 = dma.done [#allocation3], 2048
    $region21: #{tpu_custom_call.1} parent=1 // pred_fallthru
      _
    // Predicated region
    $region22: #{tpu_custom_call.1} parent=1 // pred_check
      _
    $region23: #{tpu_custom_call.1} parent=1 // pred_check_branch
      %54 = sbr.rel (0) target = $region25
    $region24: #{tpu_custom_call.1} parent=1 // pred_region
      %55 = dma.done [#allocation6], 256
    $region25: #{tpu_custom_call.1} parent=1 // pred_fallthru
      _
    // Predicated region
    $region26: #{tpu_custom_call.1} parent=1 // pred_check
      _
    $region27: #{tpu_custom_call.1} parent=1 // pred_check_branch
      %57 = sbr.rel (0) target = $region29
    $region28: #{tpu_custom_call.1} parent=1 // pred_region
      %58 = dma.done [#allocation6], 512
    $region29: #{tpu_custom_call.1} parent=1 // pred_fallthru
      _
    %v59 = vld [vmem:[#allocation5] sm:$0xff]
    %v60 = vld [vmem:[#allocation5 + $0x8] sm:$0xff]
    %v61 = vld [vmem:[#allocation7] sm:$0xff]
    %v62 = vld [vmem:[#allocation7 + $0x8] sm:$0xff]
    %v63 = vld [vmem:[#allocation7 + $0x10] sm:$0xff]
    %v64 = vld [vmem:[#allocation7 + $0x18] sm:$0xff]
    %v65 = vld [vmem:[%s3] sm:$0x3]
    %v66 = vld [vmem:[#allocation2] sm:$0xff]
    %v67 = vld [vmem:[#allocation2 + $0x8] sm:$0xff]
    %v68 = vld [vmem:[#allocation2 + $0x10] sm:$0xff]
    %v69 = vld [vmem:[#allocation2 + $0x18] sm:$0xff]
    %vm70 = vcmask 130048
    %v72 = vsel %vm70, %v59, 0
    %v75 = vsel %vm70, %v60, 0
    %77 = vmatprep.subr.mxu0 %v67
    %78 = vmatpush1.msra.mxu0 %v66
    %79 = vmatprep.subr.mxu0 %v69
    %80 = vmatpush1.msra.mxu0 %v68
    %81 = vmatprep.subr.mxu0 0.0
    %82 = vmatpush1.msra.mxu0 0.0
    %83 = vmatprep.subr.mxu0 0.0
    %84 = vmatpush1.msra.mxu0 0.0
    %85 = vmatprep.subr.mxu0 0.0
    %86 = vmatpush1.msra.mxu0 0.0
    %87 = vmatprep.subr.mxu0 0.0
    %88 = vmatpush1.msra.mxu0 0.0
    %89 = vmatprep.subr.mxu0 0.0
    %90 = vmatpush1.msra.mxu0 0.0
    %91 = vmatprep.subr.mxu0 0.0
    %92 = vmatpush1.msra.mxu0 0.0
    %93 = vmatprep.subr.mxu0 0.0
    %94 = vmatpush1.msra.mxu0 0.0
    %95 = vmatprep.subr.mxu0 0.0
    %96 = vmatpush1.msra.mxu0 0.0
    %97 = vmatprep.subr.mxu0 0.0
    %98 = vmatpush1.msra.mxu0 0.0
    %99 = vmatprep.subr.mxu0 0.0
    %100 = vmatpush1.msra.mxu0 0.0
    %101 = vmatprep.subr.mxu0 0.0
    %102 = vmatpush1.msra.mxu0 0.0
    %103 = vmatprep.subr.mxu0 0.0
    %104 = vmatpush1.msra.mxu0 0.0
    %105 = vmatprep.subr.mxu0 0.0
    %106 = vmatpush1.msra.mxu0 0.0
    %107 = vmatprep.subr.mxu0 0.0
    %108 = vmatpush1.msra.mxu0 0.0
    %109 = vmatprep.subr.mxu0 0.0
    %110 = vmatpush1.msra.mxu0 0.0
    %111 = vmatprep.subr.mxu0 0.0
    %112 = vmatpush1.msra.mxu0 0.0
    %113 = vmatprep.subr.mxu0 0.0
    %114 = vmatpush1.msra.mxu0 0.0
    %115 = vmatprep.subr.mxu0 0.0
    %116 = vmatpush1.msra.mxu0 0.0
    %117 = vmatprep.subr.mxu0 0.0
    %118 = vmatpush1.msra.mxu0 0.0
    %119 = vmatprep.subr.mxu0 0.0
    %120 = vmatpush1.msra.mxu0 0.0
    %121 = vmatprep.subr.mxu0 0.0
    %122 = vmatpush1.msra.mxu0 0.0
    %123 = vmatprep.subr.mxu0 0.0
    %124 = vmatpush1.msra.mxu0 0.0
    %125 = vmatprep.subr.mxu0 0.0
    %126 = vmatpush1.msra.mxu0 0.0
    %127 = vmatprep.subr.mxu0 0.0
    %128 = vmatpush1.msra.mxu0 0.0
    %129 = vmatprep.subr.mxu0 0.0
    %130 = vmatpush1.msra.mxu0 0.0
    %131 = vmatprep.subr.mxu0 0.0
    %132 = vmatpush1.msra.mxu0 0.0
    %133 = vmatprep.subr.mxu0 0.0
    %134 = vmatpush1.msra.mxu0 0.0
    %135 = vmatprep.subr.mxu0 0.0
    %136 = vmatpush1.msra.mxu0 0.0
    %137 = vmatprep.subr.mxu0 0.0
    %138 = vmatpush1.msra.mxu0 0.0
    %139 = vmatprep.subr.mxu0 0.0
    %140 = vmatpush1.msra.mxu0 0.0
    %141 = vmatprep.mubr.f32.mxu0 0.0
    %142 = vmatmul.mubr.f32.gmra.mrb[0].mxu0 %v72
    %v143 = vpop.f32.mrb[0].mxu0
    %v144 = vadd.f32 0.0, %v143
    %v145 = vpop.f32.mrb[0].mxu0
    %v146 = vadd.f32 0.0, %v145
    %147 = vmatprep.mubr.f32.mxu0 0.0
    %148 = vmatmul.mubr.f32.gmra.mrb[0].mxu0 %v75
    %v149 = vpop.f32.mrb[0].mxu0
    %v150 = vadd.f32 0.0, %v149
    %v151 = vpop.f32.mrb[0].mxu0
    %v152 = vadd.f32 0.0, %v151
    %153 = vdwg.mxu0
    %v154 = vmul.f32 %v144, %v144
    %v155 = vmul.f32 %v146, %v146
    %v156 = vmul.f32 %v150, %v150
    %v157 = vmul.f32 %v152, %v152
    %v158 = vadd.f32 %v154, %v156
    %v159 = vrot.slane %v158, 4
    %v160 = vadd.f32 %v158, %v159
    %v161 = vrot.slane %v160, 2
    %v162 = vadd.f32 %v160, %v161
    %v163 = vrot.slane %v162, 1
    %v164 = vadd.f32 %v162, %v163
    %vm165 = vcmask 556032
    %v166 = vsel %vm165, %v155, 0.0
    %v167 = vsel %vm165, %v157, 0.0
    %v168 = vadd.f32 %v166, %v167
    %v169 = vrot.slane %v168, 4
    %v170 = vadd.f32 %v168, %v169
    %v171 = vrot.slane %v170, 2
    %v172 = vadd.f32 %v170, %v171
    %v173 = vrot.slane %v172, 1
    %v174 = vadd.f32 %v172, %v173
    %v175 = vsub.f32 %v164, %v156
    %v176 = vsub.f32 %v174, %v157
    %v177 = vmul.f32 %v175, 0.06666667
    %v178 = vmul.f32 %v176, 0.06666667
    %v179 = vsub.f32 %v177, %v156
    %v180 = vsub.f32 %v178, %v157
    %v181 = vmax.f32 %v179, 0.0
    %v182 = vmax.f32 %v180, 0.0
    %v183 = vrsqrt.pop %v181
    %v184 = vrsqrt.pop %v182
    %v185 = vmul.f32 %v61, %v144
    %v186 = vmul.f32 %v62, %v146
    %v187 = vmul.f32 %v63, %v150
    %v188 = vmul.f32 %v64, %v152
    %v189 = vadd.f32 %v185, %v187
    %v190 = vrot.slane %v189, 4
    %v191 = vadd.f32 %v189, %v190
    %v192 = vrot.slane %v191, 2
    %v193 = vadd.f32 %v191, %v192
    %v194 = vrot.slane %v193, 1
    %v195 = vadd.f32 %v193, %v194
    %v196 = vsel %vm165, %v186, 0.0
    %v197 = vsel %vm165, %v188, 0.0
    %v198 = vadd.f32 %v196, %v197
    %v199 = vrot.slane %v198, 4
    %v200 = vadd.f32 %v198, %v199
    %v201 = vrot.slane %v200, 2
    %v202 = vadd.f32 %v200, %v201
    %v203 = vrot.slane %v202, 1
    %v204 = vadd.f32 %v202, %v203
    %v206 = vlaneseq
    %v207 = vshrl.u32 %v206, 7
    %v208 = vsub.s32 0, %v207
    %v209 = vrot.slane %v65, %v208
    %v210 = vlaneseq
    %v211 = vshrl.u32 %v210, 7
    %v212 = vsub.s32 1, %v211
    %v213 = vrot.slane %v65, %v212
    %v216 = vmul.f32 %v150, %v209
    %v217 = vmul.f32 %v152, %v213
    %v218 = vsub.f32 %v195, %v216
    %v219 = vsub.f32 %v204, %v217
    %v220 = vmul.f32 %v183, %v218
    %v221 = vmul.f32 %v184, %v219
    %v222 = vxor.u32 %v220, 2147483648
    %v223 = vxor.u32 %v221, 2147483648
    %v224 = vmul.f32 %v222, 1.442695
    %v225 = vpow.pop %v224
    %v226 = vmul.f32 %v223, 1.442695
    %v227 = vpow.pop %v226
    %v228 = vadd.f32 %v225, 1.0
    %v229 = vadd.f32 %v227, 1.0
    %v230 = vrcp.pop %v228
    %v231 = vmul.f32 1.0, %v230
    %v232 = vrcp.pop %v229
    %v233 = vmul.f32 1.0, %v232
    %v234 = vlaneseq
    %v235 = vshrl.u32 %v234, 7
    %v236 = vsub.s32 7, %v235
    %v237 = vrot.slane %v231, %v236
    %v238 = vlaneseq
    %v239 = vshrl.u32 %v238, 7
    %v240 = vsub.s32 7, %v239
    %v241 = vrot.slane %v233, %v240
    %v242 = vmul.f32 %v66, %v237
    %v243 = vmul.f32 %v67, %v241
    %v244 = vmul.f32 %v68, %v237
    %v245 = vmul.f32 %v69, %v241
    %246 = vst [vmem:[#allocation8] sm:$0xff] %v242
    %247 = vst.msk [vmem:[#allocation8 + $0x8] sm:$0xff] %vm165, %v243
    %248 = vst [vmem:[#allocation8 + $0x10] sm:$0xff] %v244
    %249 = vst.msk [vmem:[#allocation8 + $0x18] sm:$0xff] %vm165, %v245
    %s250 = scalar_lea.vmem [#allocation2], 32
    %v251 = vld [vmem:[%s250] sm:$0xff]
    %v252 = vld [vmem:[%s250 + $0x8] sm:$0xff]
    %v253 = vld [vmem:[%s250 + $0x10] sm:$0xff]
    %v254 = vld [vmem:[%s250 + $0x18] sm:$0xff]
    %255 = vmatprep.subr.mxu0 %v252
    %256 = vmatpush1.msra.mxu0 %v251
    %257 = vmatprep.subr.mxu0 %v254
    %258 = vmatpush1.msra.mxu0 %v253
    %259 = vmatprep.subr.mxu0 0.0
    %260 = vmatpush1.msra.mxu0 0.0
    %261 = vmatprep.subr.mxu0 0.0
    %262 = vmatpush1.msra.mxu0 0.0
    %263 = vmatprep.subr.mxu0 0.0
    %264 = vmatpush1.msra.mxu0 0.0
    %265 = vmatprep.subr.mxu0 0.0
    %266 = vmatpush1.msra.mxu0 0.0
    %267 = vmatprep.subr.mxu0 0.0
    %268 = vmatpush1.msra.mxu0 0.0
    %269 = vmatprep.subr.mxu0 0.0
    %270 = vmatpush1.msra.mxu0 0.0
    %271 = vmatprep.subr.mxu0 0.0
    %272 = vmatpush1.msra.mxu0 0.0
    %273 = vmatprep.subr.mxu0 0.0
    %274 = vmatpush1.msra.mxu0 0.0
    %275 = vmatprep.subr.mxu0 0.0
    %276 = vmatpush1.msra.mxu0 0.0
    %277 = vmatprep.subr.mxu0 0.0
    %278 = vmatpush1.msra.mxu0 0.0
    %279 = vmatprep.subr.mxu0 0.0
    %280 = vmatpush1.msra.mxu0 0.0
    %281 = vmatprep.subr.mxu0 0.0
    %282 = vmatpush1.msra.mxu0 0.0
    %283 = vmatprep.subr.mxu0 0.0
    %284 = vmatpush1.msra.mxu0 0.0
    %285 = vmatprep.subr.mxu0 0.0
    %286 = vmatpush1.msra.mxu0 0.0
    %287 = vmatprep.subr.mxu0 0.0
    %288 = vmatpush1.msra.mxu0 0.0
    %289 = vmatprep.subr.mxu0 0.0
    %290 = vmatpush1.msra.mxu0 0.0
    %291 = vmatprep.subr.mxu0 0.0
    %292 = vmatpush1.msra.mxu0 0.0
    %293 = vmatprep.subr.mxu0 0.0
    %294 = vmatpush1.msra.mxu0 0.0
    %295 = vmatprep.subr.mxu0 0.0
    %296 = vmatpush1.msra.mxu0 0.0
    %297 = vmatprep.subr.mxu0 0.0
    %298 = vmatpush1.msra.mxu0 0.0
    %299 = vmatprep.subr.mxu0 0.0
    %300 = vmatpush1.msra.mxu0 0.0
    %301 = vmatprep.subr.mxu0 0.0
    %302 = vmatpush1.msra.mxu0 0.0
    %303 = vmatprep.subr.mxu0 0.0
    %304 = vmatpush1.msra.mxu0 0.0
    %305 = vmatprep.subr.mxu0 0.0
    %306 = vmatpush1.msra.mxu0 0.0
    %307 = vmatprep.subr.mxu0 0.0
    %308 = vmatpush1.msra.mxu0 0.0
    %309 = vmatprep.subr.mxu0 0.0
    %310 = vmatpush1.msra.mxu0 0.0
    %311 = vmatprep.subr.mxu0 0.0
    %312 = vmatpush1.msra.mxu0 0.0
    %313 = vmatprep.subr.mxu0 0.0
    %314 = vmatpush1.msra.mxu0 0.0
    %315 = vmatprep.subr.mxu0 0.0
    %316 = vmatpush1.msra.mxu0 0.0
    %317 = vmatprep.subr.mxu0 0.0
    %318 = vmatpush1.msra.mxu0 0.0
    %319 = vmatprep.mubr.f32.mxu0 0.0
    %320 = vmatmul.mubr.f32.gmra.mrb[0].mxu0 %v72
    %v321 = vpop.f32.mrb[0].mxu0
    %v322 = vadd.f32 0.0, %v321
    %v323 = vpop.f32.mrb[0].mxu0
    %v324 = vadd.f32 0.0, %v323
    %325 = vmatprep.mubr.f32.mxu0 0.0
    %326 = vmatmul.mubr.f32.gmra.mrb[0].mxu0 %v75
    %v327 = vpop.f32.mrb[0].mxu0
    %v328 = vadd.f32 0.0, %v327
    %v329 = vpop.f32.mrb[0].mxu0
    %v330 = vadd.f32 0.0, %v329
    %331 = vdwg.mxu0
    %v332 = vmul.f32 %v322, %v322
    %v333 = vmul.f32 %v324, %v324
    %v334 = vmul.f32 %v328, %v328
    %v335 = vmul.f32 %v330, %v330
    %v336 = vadd.f32 %v332, %v334
    %v337 = vrot.slane %v336, 4
    %v338 = vadd.f32 %v336, %v337
    %v339 = vrot.slane %v338, 2
    %v340 = vadd.f32 %v338, %v339
    %v341 = vrot.slane %v340, 1
    %v342 = vadd.f32 %v340, %v341
    %v343 = vsel %vm165, %v333, 0.0
    %v344 = vsel %vm165, %v335, 0.0
    %v345 = vadd.f32 %v343, %v344
    %v346 = vrot.slane %v345, 4
    %v347 = vadd.f32 %v345, %v346
    %v348 = vrot.slane %v347, 2
    %v349 = vadd.f32 %v347, %v348
    %v350 = vrot.slane %v349, 1
    %v351 = vadd.f32 %v349, %v350
    %v352 = vsub.f32 %v342, %v334
    %v353 = vsub.f32 %v351, %v335
    %v354 = vmul.f32 %v352, 0.06666667
    %v355 = vmul.f32 %v353, 0.06666667
    %v356 = vsub.f32 %v354, %v334
    %v357 = vsub.f32 %v355, %v335
    %v358 = vmax.f32 %v356, 0.0
    %v359 = vmax.f32 %v357, 0.0
    %v360 = vrsqrt.pop %v358
    %v361 = vrsqrt.pop %v359
    %v362 = vmul.f32 %v61, %v322
    %v363 = vmul.f32 %v62, %v324
    %v364 = vmul.f32 %v63, %v328
    %v365 = vmul.f32 %v64, %v330
    %v366 = vadd.f32 %v362, %v364
    %v367 = vrot.slane %v366, 4
    %v368 = vadd.f32 %v366, %v367
    %v369 = vrot.slane %v368, 2
    %v370 = vadd.f32 %v368, %v369
    %v371 = vrot.slane %v370, 1
    %v372 = vadd.f32 %v370, %v371
    %v373 = vsel %vm165, %v363, 0.0
    %v374 = vsel %vm165, %v365, 0.0
    %v375 = vadd.f32 %v373, %v374
    %v376 = vrot.slane %v375, 4
    %v377 = vadd.f32 %v375, %v376
    %v378 = vrot.slane %v377, 2
    %v379 = vadd.f32 %v377, %v378
    %v380 = vrot.slane %v379, 1
    %v381 = vadd.f32 %v379, %v380
    %v382 = vmul.f32 %v328, %v209
    %v383 = vmul.f32 %v330, %v213
    %v384 = vsub.f32 %v372, %v382
    %v385 = vsub.f32 %v381, %v383
    %v386 = vmul.f32 %v360, %v384
    %v387 = vmul.f32 %v361, %v385
    %v388 = vxor.u32 %v386, 2147483648
    %v389 = vxor.u32 %v387, 2147483648
    %v390 = vmul.f32 %v388, 1.442695
    %v391 = vpow.pop %v390
    %v392 = vmul.f32 %v389, 1.442695
    %v393 = vpow.pop %v392
    %v394 = vadd.f32 %v391, 1.0
    %v395 = vadd.f32 %v393, 1.0
    %v396 = vrcp.pop %v394
    %v397 = vmul.f32 1.0, %v396
    %v398 = vrcp.pop %v395
    %v399 = vmul.f32 1.0, %v398
    %v400 = vlaneseq
    %v401 = vshrl.u32 %v400, 7
    %v402 = vsub.s32 7, %v401
    %v403 = vrot.slane %v397, %v402
    %v404 = vlaneseq
    %v405 = vshrl.u32 %v404, 7
    %v406 = vsub.s32 7, %v405
    %v407 = vrot.slane %v399, %v406
    %v408 = vmul.f32 %v251, %v403
    %v409 = vmul.f32 %v252, %v407
    %v410 = vmul.f32 %v253, %v403
    %v411 = vmul.f32 %v254, %v407
    %s412 = scalar_lea.vmem [#allocation8], 32
    %413 = vst [vmem:[%s412] sm:$0xff] %v408
    %414 = vst.msk [vmem:[%s412 + $0x8] sm:$0xff] %vm165, %v409
    %415 = vst [vmem:[%s412 + $0x10] sm:$0xff] %v410
    %416 = vst.msk [vmem:[%s412 + $0x18] sm:$0xff] %vm165, %v411
    %s417 = scalar_lea.vmem [#allocation2], 64
    %v418 = vld [vmem:[%s417] sm:$0xff]
    %v419 = vld [vmem:[%s417 + $0x8] sm:$0xff]
    %v420 = vld [vmem:[%s417 + $0x10] sm:$0xff]
    %v421 = vld [vmem:[%s417 + $0x18] sm:$0xff]
    %422 = vmatprep.subr.mxu0 %v419
    %423 = vmatpush1.msra.mxu0 %v418
    %424 = vmatprep.subr.mxu0 %v421
    %425 = vmatpush1.msra.mxu0 %v420
    %426 = vmatprep.subr.mxu0 0.0
    %427 = vmatpush1.msra.mxu0 0.0
    %428 = vmatprep.subr.mxu0 0.0
    %429 = vmatpush1.msra.mxu0 0.0
    %430 = vmatprep.subr.mxu0 0.0
    %431 = vmatpush1.msra.mxu0 0.0
    %432 = vmatprep.subr.mxu0 0.0
    %433 = vmatpush1.msra.mxu0 0.0
    %434 = vmatprep.subr.mxu0 0.0
    %435 = vmatpush1.msra.mxu0 0.0
    %436 = vmatprep.subr.mxu0 0.0
    %437 = vmatpush1.msra.mxu0 0.0
    %438 = vmatprep.subr.mxu0 0.0
    %439 = vmatpush1.msra.mxu0 0.0
    %440 = vmatprep.subr.mxu0 0.0
    %441 = vmatpush1.msra.mxu0 0.0
    %442 = vmatprep.subr.mxu0 0.0
    %443 = vmatpush1.msra.mxu0 0.0
    %444 = vmatprep.subr.mxu0 0.0
    %445 = vmatpush1.msra.mxu0 0.0
    %446 = vmatprep.subr.mxu0 0.0
    %447 = vmatpush1.msra.mxu0 0.0
    %448 = vmatprep.subr.mxu0 0.0
    %449 = vmatpush1.msra.mxu0 0.0
    %450 = vmatprep.subr.mxu0 0.0
    %451 = vmatpush1.msra.mxu0 0.0
    %452 = vmatprep.subr.mxu0 0.0
    %453 = vmatpush1.msra.mxu0 0.0
    %454 = vmatprep.subr.mxu0 0.0
    %455 = vmatpush1.msra.mxu0 0.0
    %456 = vmatprep.subr.mxu0 0.0
    %457 = vmatpush1.msra.mxu0 0.0
    %458 = vmatprep.subr.mxu0 0.0
    %459 = vmatpush1.msra.mxu0 0.0
    %460 = vmatprep.subr.mxu0 0.0
    %461 = vmatpush1.msra.mxu0 0.0
    %462 = vmatprep.subr.mxu0 0.0
    %463 = vmatpush1.msra.mxu0 0.0
    %464 = vmatprep.subr.mxu0 0.0
    %465 = vmatpush1.msra.mxu0 0.0
    %466 = vmatprep.subr.mxu0 0.0
    %467 = vmatpush1.msra.mxu0 0.0
    %468 = vmatprep.subr.mxu0 0.0
    %469 = vmatpush1.msra.mxu0 0.0
    %470 = vmatprep.subr.mxu0 0.0
    %471 = vmatpush1.msra.mxu0 0.0
    %472 = vmatprep.subr.mxu0 0.0
    %473 = vmatpush1.msra.mxu0 0.0
    %474 = vmatprep.subr.mxu0 0.0
    %475 = vmatpush1.msra.mxu0 0.0
    %476 = vmatprep.subr.mxu0 0.0
    %477 = vmatpush1.msra.mxu0 0.0
    %478 = vmatprep.subr.mxu0 0.0
    %479 = vmatpush1.msra.mxu0 0.0
    %480 = vmatprep.subr.mxu0 0.0
    %481 = vmatpush1.msra.mxu0 0.0
    %482 = vmatprep.subr.mxu0 0.0
    %483 = vmatpush1.msra.mxu0 0.0
    %484 = vmatprep.subr.mxu0 0.0
    %485 = vmatpush1.msra.mxu0 0.0
    %486 = vmatprep.mubr.f32.mxu0 0.0
    %487 = vmatmul.mubr.f32.gmra.mrb[0].mxu0 %v72
    %v488 = vpop.f32.mrb[0].mxu0
    %v489 = vadd.f32 0.0, %v488
    %v490 = vpop.f32.mrb[0].mxu0
    %v491 = vadd.f32 0.0, %v490
    %492 = vmatprep.mubr.f32.mxu0 0.0
    %493 = vmatmul.mubr.f32.gmra.mrb[0].mxu0 %v75
    %v494 = vpop.f32.mrb[0].mxu0
    %v495 = vadd.f32 0.0, %v494
    %v496 = vpop.f32.mrb[0].mxu0
    %v497 = vadd.f32 0.0, %v496
    %498 = vdwg.mxu0
    %v499 = vmul.f32 %v489, %v489
    %v500 = vmul.f32 %v491, %v491
    %v501 = vmul.f32 %v495, %v495
    %v502 = vmul.f32 %v497, %v497
    %v503 = vadd.f32 %v499, %v501
    %v504 = vrot.slane %v503, 4
    %v505 = vadd.f32 %v503, %v504
    %v506 = vrot.slane %v505, 2
    %v507 = vadd.f32 %v505, %v506
    %v508 = vrot.slane %v507, 1
    %v509 = vadd.f32 %v507, %v508
    %v510 = vsel %vm165, %v500, 0.0
    %v511 = vsel %vm165, %v502, 0.0
    %v512 = vadd.f32 %v510, %v511
    %v513 = vrot.slane %v512, 4
    %v514 = vadd.f32 %v512, %v513
    %v515 = vrot.slane %v514, 2
    %v516 = vadd.f32 %v514, %v515
    %v517 = vrot.slane %v516, 1
    %v518 = vadd.f32 %v516, %v517
    %v519 = vsub.f32 %v509, %v501
    %v520 = vsub.f32 %v518, %v502
    %v521 = vmul.f32 %v519, 0.06666667
    %v522 = vmul.f32 %v520, 0.06666667
    %v523 = vsub.f32 %v521, %v501
    %v524 = vsub.f32 %v522, %v502
    %v525 = vmax.f32 %v523, 0.0
    %v526 = vmax.f32 %v524, 0.0
    %v527 = vrsqrt.pop %v525
    %v528 = vrsqrt.pop %v526
    %v529 = vmul.f32 %v61, %v489
    %v530 = vmul.f32 %v62, %v491
    %v531 = vmul.f32 %v63, %v495
    %v532 = vmul.f32 %v64, %v497
    %v533 = vadd.f32 %v529, %v531
    %v534 = vrot.slane %v533, 4
    %v535 = vadd.f32 %v533, %v534
    %v536 = vrot.slane %v535, 2
    %v537 = vadd.f32 %v535, %v536
    %v538 = vrot.slane %v537, 1
    %v539 = vadd.f32 %v537, %v538
    %v540 = vsel %vm165, %v530, 0.0
    %v541 = vsel %vm165, %v532, 0.0
    %v542 = vadd.f32 %v540, %v541
    %v543 = vrot.slane %v542, 4
    %v544 = vadd.f32 %v542, %v543
    %v545 = vrot.slane %v544, 2
    %v546 = vadd.f32 %v544, %v545
    %v547 = vrot.slane %v546, 1
    %v548 = vadd.f32 %v546, %v547
    %v549 = vmul.f32 %v495, %v209
    %v550 = vmul.f32 %v497, %v213
    %v551 = vsub.f32 %v539, %v549
    %v552 = vsub.f32 %v548, %v550
    %v553 = vmul.f32 %v527, %v551
    %v554 = vmul.f32 %v528, %v552
    %v555 = vxor.u32 %v553, 2147483648
    %v556 = vxor.u32 %v554, 2147483648
    %v557 = vmul.f32 %v555, 1.442695
    %v558 = vpow.pop %v557
    %v559 = vmul.f32 %v556, 1.442695
    %v560 = vpow.pop %v559
    %v561 = vadd.f32 %v558, 1.0
    %v562 = vadd.f32 %v560, 1.0
    %v563 = vrcp.pop %v561
    %v564 = vmul.f32 1.0, %v563
    %v565 = vrcp.pop %v562
    %v566 = vmul.f32 1.0, %v565
    %v567 = vlaneseq
    %v568 = vshrl.u32 %v567, 7
    %v569 = vsub.s32 7, %v568
    %v570 = vrot.slane %v564, %v569
    %v571 = vlaneseq
    %v572 = vshrl.u32 %v571, 7
    %v573 = vsub.s32 7, %v572
    %v574 = vrot.slane %v566, %v573
    %v575 = vmul.f32 %v418, %v570
    %v576 = vmul.f32 %v419, %v574
    %v577 = vmul.f32 %v420, %v570
    %v578 = vmul.f32 %v421, %v574
    %s579 = scalar_lea.vmem [#allocation8], 64
    %580 = vst [vmem:[%s579] sm:$0xff] %v575
    %581 = vst.msk [vmem:[%s579 + $0x8] sm:$0xff] %vm165, %v576
    %582 = vst [vmem:[%s579 + $0x10] sm:$0xff] %v577
    %583 = vst.msk [vmem:[%s579 + $0x18] sm:$0xff] %vm165, %v578
    %s584 = scalar_lea.vmem [#allocation2], 96
    %v585 = vld [vmem:[%s584] sm:$0xff]
    %v586 = vld [vmem:[%s584 + $0x8] sm:$0xff]
    %v587 = vld [vmem:[%s584 + $0x10] sm:$0xff]
    %v588 = vld [vmem:[%s584 + $0x18] sm:$0xff]
    %589 = vmatprep.subr.mxu0 %v586
    %590 = vmatpush1.msra.mxu0 %v585
    %591 = vmatprep.subr.mxu0 %v588
    %592 = vmatpush1.msra.mxu0 %v587
    %593 = vmatprep.subr.mxu0 0.0
    %594 = vmatpush1.msra.mxu0 0.0
    %595 = vmatprep.subr.mxu0 0.0
    %596 = vmatpush1.msra.mxu0 0.0
    %597 = vmatprep.subr.mxu0 0.0
    %598 = vmatpush1.msra.mxu0 0.0
    %599 = vmatprep.subr.mxu0 0.0
    %600 = vmatpush1.msra.mxu0 0.0
    %601 = vmatprep.subr.mxu0 0.0
    %602 = vmatpush1.msra.mxu0 0.0
    %603 = vmatprep.subr.mxu0 0.0
    %604 = vmatpush1.msra.mxu0 0.0
    %605 = vmatprep.subr.mxu0 0.0
    %606 = vmatpush1.msra.mxu0 0.0
    %607 = vmatprep.subr.mxu0 0.0
    %608 = vmatpush1.msra.mxu0 0.0
    %609 = vmatprep.subr.mxu0 0.0
    %610 = vmatpush1.msra.mxu0 0.0
    %611 = vmatprep.subr.mxu0 0.0
    %612 = vmatpush1.msra.mxu0 0.0
    %613 = vmatprep.subr.mxu0 0.0
    %614 = vmatpush1.msra.mxu0 0.0
    %615 = vmatprep.subr.mxu0 0.0
    %616 = vmatpush1.msra.mxu0 0.0
    %617 = vmatprep.subr.mxu0 0.0
    %618 = vmatpush1.msra.mxu0 0.0
    %619 = vmatprep.subr.mxu0 0.0
    %620 = vmatpush1.msra.mxu0 0.0
    %621 = vmatprep.subr.mxu0 0.0
    %622 = vmatpush1.msra.mxu0 0.0
    %623 = vmatprep.subr.mxu0 0.0
    %624 = vmatpush1.msra.mxu0 0.0
    %625 = vmatprep.subr.mxu0 0.0
    %626 = vmatpush1.msra.mxu0 0.0
    %627 = vmatprep.subr.mxu0 0.0
    %628 = vmatpush1.msra.mxu0 0.0
    %629 = vmatprep.subr.mxu0 0.0
    %630 = vmatpush1.msra.mxu0 0.0
    %631 = vmatprep.subr.mxu0 0.0
    %632 = vmatpush1.msra.mxu0 0.0
    %633 = vmatprep.subr.mxu0 0.0
    %634 = vmatpush1.msra.mxu0 0.0
    %635 = vmatprep.subr.mxu0 0.0
    %636 = vmatpush1.msra.mxu0 0.0
    %637 = vmatprep.subr.mxu0 0.0
    %638 = vmatpush1.msra.mxu0 0.0
    %639 = vmatprep.subr.mxu0 0.0
    %640 = vmatpush1.msra.mxu0 0.0
    %641 = vmatprep.subr.mxu0 0.0
    %642 = vmatpush1.msra.mxu0 0.0
    %643 = vmatprep.subr.mxu0 0.0
    %644 = vmatpush1.msra.mxu0 0.0
    %645 = vmatprep.subr.mxu0 0.0
    %646 = vmatpush1.msra.mxu0 0.0
    %647 = vmatprep.subr.mxu0 0.0
    %648 = vmatpush1.msra.mxu0 0.0
    %649 = vmatprep.subr.mxu0 0.0
    %650 = vmatpush1.msra.mxu0 0.0
    %651 = vmatprep.subr.mxu0 0.0
    %652 = vmatpush1.msra.mxu0 0.0
    %653 = vmatprep.mubr.f32.mxu0 0.0
    %654 = vmatmul.mubr.f32.gmra.mrb[0].mxu0 %v72
    %v655 = vpop.f32.mrb[0].mxu0
    %v656 = vadd.f32 0.0, %v655
    %v657 = vpop.f32.mrb[0].mxu0
    %v658 = vadd.f32 0.0, %v657
    %659 = vmatprep.mubr.f32.mxu0 0.0
    %660 = vmatmul.mubr.f32.gmra.mrb[0].mxu0 %v75
    %v661 = vpop.f32.mrb[0].mxu0
    %v662 = vadd.f32 0.0, %v661
    %v663 = vpop.f32.mrb[0].mxu0
    %v664 = vadd.f32 0.0, %v663
    %665 = vdwg.mxu0
    %v666 = vmul.f32 %v656, %v656
    %v667 = vmul.f32 %v658, %v658
    %v668 = vmul.f32 %v662, %v662
    %v669 = vmul.f32 %v664, %v664
    %v670 = vadd.f32 %v666, %v668
    %v671 = vrot.slane %v670, 4
    %v672 = vadd.f32 %v670, %v671
    %v673 = vrot.slane %v672, 2
    %v674 = vadd.f32 %v672, %v673
    %v675 = vrot.slane %v674, 1
    %v676 = vadd.f32 %v674, %v675
    %v677 = vsel %vm165, %v667, 0.0
    %v678 = vsel %vm165, %v669, 0.0
    %v679 = vadd.f32 %v677, %v678
    %v680 = vrot.slane %v679, 4
    %v681 = vadd.f32 %v679, %v680
    %v682 = vrot.slane %v681, 2
    %v683 = vadd.f32 %v681, %v682
    %v684 = vrot.slane %v683, 1
    %v685 = vadd.f32 %v683, %v684
    %v686 = vsub.f32 %v676, %v668
    %v687 = vsub.f32 %v685, %v669
    %v688 = vmul.f32 %v686, 0.06666667
    %v689 = vmul.f32 %v687, 0.06666667
    %v690 = vsub.f32 %v688, %v668
    %v691 = vsub.f32 %v689, %v669
    %v692 = vmax.f32 %v690, 0.0
    %v693 = vmax.f32 %v691, 0.0
    %v694 = vrsqrt.pop %v692
    %v695 = vrsqrt.pop %v693
    %v696 = vmul.f32 %v61, %v656
    %v697 = vmul.f32 %v62, %v658
    %v698 = vmul.f32 %v63, %v662
    %v699 = vmul.f32 %v64, %v664
    %v700 = vadd.f32 %v696, %v698
    %v701 = vrot.slane %v700, 4
    %v702 = vadd.f32 %v700, %v701
    %v703 = vrot.slane %v702, 2
    %v704 = vadd.f32 %v702, %v703
    %v705 = vrot.slane %v704, 1
    %v706 = vadd.f32 %v704, %v705
    %v707 = vsel %vm165, %v697, 0.0
    %v708 = vsel %vm165, %v699, 0.0
    %v709 = vadd.f32 %v707, %v708
    %v710 = vrot.slane %v709, 4
    %v711 = vadd.f32 %v709, %v710
    %v712 = vrot.slane %v711, 2
    %v713 = vadd.f32 %v711, %v712
    %v714 = vrot.slane %v713, 1
    %v715 = vadd.f32 %v713, %v714
    %v716 = vmul.f32 %v662, %v209
    %v717 = vmul.f32 %v664, %v213
    %v718 = vsub.f32 %v706, %v716
    %v719 = vsub.f32 %v715, %v717
    %v720 = vmul.f32 %v694, %v718
    %v721 = vmul.f32 %v695, %v719
    %v722 = vxor.u32 %v720, 2147483648
    %v723 = vxor.u32 %v721, 2147483648
    %v724 = vmul.f32 %v722, 1.442695
    %v725 = vpow.pop %v724
    %v726 = vmul.f32 %v723, 1.442695
    %v727 = vpow.pop %v726
    %v728 = vadd.f32 %v725, 1.0
    %v729 = vadd.f32 %v727, 1.0
    %v730 = vrcp.pop %v728
    %v731 = vmul.f32 1.0, %v730
    %v732 = vrcp.pop %v729
    %v733 = vmul.f32 1.0, %v732
    %v734 = vlaneseq
    %v735 = vshrl.u32 %v734, 7
    %v736 = vsub.s32 7, %v735
    %v737 = vrot.slane %v731, %v736
    %v738 = vlaneseq
    %v739 = vshrl.u32 %v738, 7
    %v740 = vsub.s32 7, %v739
    %v741 = vrot.slane %v733, %v740
    %v742 = vmul.f32 %v585, %v737
    %v743 = vmul.f32 %v586, %v741
    %v744 = vmul.f32 %v587, %v737
    %v745 = vmul.f32 %v588, %v741
    %s746 = scalar_lea.vmem [#allocation8], 96
    %747 = vst [vmem:[%s746] sm:$0xff] %v742
    %748 = vst.msk [vmem:[%s746 + $0x8] sm:$0xff] %vm165, %v743
    %749 = vst [vmem:[%s746 + $0x10] sm:$0xff] %v744
    %750 = vst.msk [vmem:[%s746 + $0x18] sm:$0xff] %vm165, %v745
    // Predicated region
    $region30: #{tpu_custom_call.1} parent=1 // pred_check
      _
    $region31: #{tpu_custom_call.1} parent=1 // pred_check_branch
      %752 = sbr.rel (0) target = $region33
    $region32: #{tpu_custom_call.1} parent=1 // pred_region
      %s754 = ssub.s32 2048, 2048
      %755 = vsyncadd [#allocation4], %s754
      %s756 = sshll.u32 [#allocation8], 4
      %s757 = int_to_ptr.vmem [resolvable:$true] %s756
      %762 = dma.vmem_to_hbm [thread:$0]  %s757, 2048, %s4, [#allocation4], 256, 256, 16
    $region33: #{tpu_custom_call.1} parent=1 // pred_fallthru
      _
    // Predicated region
    $region34: #{tpu_custom_call.1} parent=1 // pred_check
      _
    $region35: #{tpu_custom_call.1} parent=1 // pred_check_branch
      %764 = sbr.rel (0) target = $region37
    $region36: #{tpu_custom_call.1} parent=1 // pred_region
      %765 = dma.done [#allocation4], 2048
    $region37: #{tpu_custom_call.1} parent=1 // pred_fallthru
      _
    %766 = vsyncpa [#allocation3], 1
    %767 = vsyncpa [#allocation6], 1
    %768 = vsyncpa [#allocation4], 1

</llo_original>
